<compile_context>
chip_gen: v7x
topology: tpu7x:2x2x1
jax: 0.10.0
libtpu: 0.0.40
codegen_flags: <defaults>
</compile_context>

<pallas_src>
import functools

import jax
import jax.numpy as jnp
from jax.experimental import pallas as pl
from jax.experimental.pallas import tpu as pltpu


def _bn_relu(h, gamma, beta, ones_row, inv_n, eps):
    """Fused BatchNorm1d (train-mode stats) + ReLU.

    Batch-axis reduction is done on the MXU: one (1,N)@(N,2F) matmul yields
    [sum(h), sum(h*h)] in a single pass; the affine is folded to one FMA.
    """
    f = h.shape[-1]
    stats = jnp.dot(ones_row, jnp.concatenate([h, h * h], axis=-1),
                    preferred_element_type=jnp.float32)          # (1, 2F)
    mean = stats[:, :f] * inv_n                                   # (1, F)
    var = stats[:, f:] * inv_n - mean * mean                      # biased var
    scale = gamma * jax.lax.rsqrt(var + eps)                      # (1, F)
    shift = beta - mean * scale                                   # (1, F)
    return jnp.maximum(h * scale + shift, 0.0)


def _bin_shuffle_kernel(x_ref, w1t_ref, g1_ref, b1_ref, w2t_ref, g2_ref, b2_ref,
                        o_ref, *, eps):
    x = x_ref[0]                                  # (N, C) f32, no redundant cast
    n = x.shape[0]
    ones_row = jnp.ones((1, n), jnp.float32)
    inv_n = jnp.float32(1.0 / n)

    # ---- Linear 1 (no bias): (N, C) @ (C, H) on the MXU --------------------
    h = jnp.dot(x, w1t_ref[...], preferred_element_type=jnp.float32)
    # ---- BatchNorm1d + ReLU (MXU stats, fused affine) ----------------------
    h = _bn_relu(h, g1_ref[...], b1_ref[...], ones_row, inv_n, eps)

    # ---- Linear 2 (no bias): (N, H) @ (H, O) -------------------------------
    y = jnp.dot(h, w2t_ref[...], preferred_element_type=jnp.float32)
    # ---- BatchNorm1d + ReLU -------------------------------------------------
    y = _bn_relu(y, g2_ref[...], b2_ref[...], ones_row, inv_n, eps)

    # NOTE: O=16 -> lane-sparse (masked) stores; only matters if this ever
    # becomes compute-bound, in which case pack instances lane-dense upstream.
    o_ref[0] = y.astype(o_ref.dtype)


def bin_shuffle_forward(x, w1, gamma1, beta1, w2, gamma2, beta2, *, eps=1e-3):
    """Forward pass of `bin_shuffle`.

    x:  (B, N, C) or (N, C) float32 -- B independent instances, BN stats are
        computed per instance over its N rows (PyTorch train-mode forward).
    w1: (C//2, C), w2: (O, C//2)  -- PyTorch Linear weight layout.
    """
    squeeze = (x.ndim == 2)
    if squeeze:
        x = x[None]
    B, N, C = x.shape
    H = w1.shape[0]
    O = w2.shape[0]

    # Glue: pre-transpose weights, make BN params 2-D (1, feat) for lane layout.
    w1t = jnp.asarray(w1).T            # (C, H)
    w2t = jnp.asarray(w2).T            # (H, O)
    g1 = jnp.asarray(gamma1).reshape(1, H)
    b1 = jnp.asarray(beta1).reshape(1, H)
    g2 = jnp.asarray(gamma2).reshape(1, O)
    b2 = jnp.asarray(beta2).reshape(1, O)

    kernel = functools.partial(_bin_shuffle_kernel, eps=eps)

    out = pl.pallas_call(
        kernel,
        out_shape=jax.ShapeDtypeStruct((B, N, O), x.dtype),
        grid=(B,),
        in_specs=[
            pl.BlockSpec((1, N, C), lambda b: (b, 0, 0)),   # per-instance input
            pl.BlockSpec((C, H), lambda b: (0, 0)),         # shared weights
            pl.BlockSpec((1, H), lambda b: (0, 0)),
            pl.BlockSpec((1, H), lambda b: (0, 0)),
            pl.BlockSpec((H, O), lambda b: (0, 0)),
            pl.BlockSpec((1, O), lambda b: (0, 0)),
            pl.BlockSpec((1, O), lambda b: (0, 0)),
        ],
        out_specs=pl.BlockSpec((1, N, O), lambda b: (b, 0, 0)),
        compiler_params=pltpu.CompilerParams(
            dimension_semantics=("parallel",)),   # megacore split on v7x
    )(x, w1t, g1, b1, w2t, g2, b2)

    return out[0] if squeeze else out


def _reference_single(x, w1, g1, b1, w2, g2, b2, eps=1e-3):
    h = x @ w1.T
    m = h.mean(0)
    v = ((h - m) ** 2).mean(0)
    h = (h - m) / jnp.sqrt(v + eps) * g1 + b1
    h = jnp.maximum(h, 0.0)
    y = h @ w2.T
    m = y.mean(0)
    v = ((y - m) ** 2).mean(0)
    y = (y - m) / jnp.sqrt(v + eps) * g2 + b2
    return jnp.maximum(y, 0.0)


if __name__ == "__main__":
    B = 8                  # batched problem instances behind one pallas_call
    N = 64                 # rows per instance (BN batch)
    in_channels = 32       # C
    out_channels = 16      # O
    hidden = in_channels // 2

    key = jax.random.PRNGKey(0)
    kx, k1, k2, kg1, kb1, kg2, kb2 = jax.random.split(key, 7)

    x = jax.random.normal(kx, (B, N, in_channels), dtype=jnp.float32)

    # Deterministic parameter init (PyTorch Linear layout: (out_feat, in_feat)).
    w1 = jax.random.normal(k1, (hidden, in_channels), dtype=jnp.float32) * 0.1
    w2 = jax.random.normal(k2, (out_channels, hidden), dtype=jnp.float32) * 0.1
    gamma1 = 1.0 + 0.1 * jax.random.normal(kg1, (hidden,), dtype=jnp.float32)
    beta1 = 0.1 * jax.random.normal(kb1, (hidden,), dtype=jnp.float32)
    gamma2 = 1.0 + 0.1 * jax.random.normal(kg2, (out_channels,), dtype=jnp.float32)
    beta2 = 0.1 * jax.random.normal(kb2, (out_channels,), dtype=jnp.float32)

    out = bin_shuffle_forward(x, w1, gamma1, beta1, w2, gamma2, beta2)
    out = jax.block_until_ready(out)
    assert out.shape == (B, N, out_channels)

    ref = jax.vmap(_reference_single,
                   in_axes=(0, None, None, None, None, None, None))(
        x, w1, gamma1, beta1, w2, gamma2, beta2)
    assert jnp.allclose(out, ref, atol=2e-4, rtol=2e-4)

    # Single-instance (N, C) path still works.
    out1 = bin_shuffle_forward(x[0], w1, gamma1, beta1, w2, gamma2, beta2)
    out1 = jax.block_until_ready(out1)
    assert out1.shape == (N, out_channels)
    assert jnp.allclose(out1, ref[0], atol=2e-4, rtol=2e-4)

    print("KERNEL_OK")
</pallas_src>

<mosaic_0001>
module attributes {stable_mosaic.version = 11 : i64} {
  func.func @_bin_shuffle_kernel(%arg0: i32, %arg1: memref<1x64x32xf32, #tpu.memory_space<vmem>>, %arg2: memref<32x16xf32, #tpu.memory_space<vmem>>, %arg3: memref<1x16xf32, #tpu.memory_space<vmem>>, %arg4: memref<1x16xf32, #tpu.memory_space<vmem>>, %arg5: memref<16x16xf32, #tpu.memory_space<vmem>>, %arg6: memref<1x16xf32, #tpu.memory_space<vmem>>, %arg7: memref<1x16xf32, #tpu.memory_space<vmem>>, %arg8: memref<1x64x16xf32, #tpu.memory_space<vmem>>) attributes {dimension_semantics = [#tpu.dimension_semantics<parallel>], iteration_bounds = array<i64: 8>, scalar_prefetch = 0 : i64, scratch_operands = 0 : i64, tpu.core_type = #tpu.core_type<tc>, window_params = [{transform_indices = @transform_0, window_bounds = array<i64: 1, 64, 32>}, {pipeline_mode = #tpu.pipeline_mode<synchronous>, transform_indices = @transform_1, window_bounds = array<i64: 32, 16>}, {pipeline_mode = #tpu.pipeline_mode<synchronous>, transform_indices = @transform_2, window_bounds = array<i64: 1, 16>}, {pipeline_mode = #tpu.pipeline_mode<synchronous>, transform_indices = @transform_3, window_bounds = array<i64: 1, 16>}, {pipeline_mode = #tpu.pipeline_mode<synchronous>, transform_indices = @transform_4, window_bounds = array<i64: 16, 16>}, {pipeline_mode = #tpu.pipeline_mode<synchronous>, transform_indices = @transform_5, window_bounds = array<i64: 1, 16>}, {pipeline_mode = #tpu.pipeline_mode<synchronous>, transform_indices = @transform_6, window_bounds = array<i64: 1, 16>}, {transform_indices = @transform_7, window_bounds = array<i64: 1, 64, 16>}]} {
    %c0 = arith.constant 0 : index
    %c0_0 = arith.constant 0 : index
    %c0_1 = arith.constant 0 : index
    %0 = vector.load %arg1[%c0, %c0_0, %c0_1] : memref<1x64x32xf32, #tpu.memory_space<vmem>>, vector<1x64x32xf32>
    %1 = vector.shape_cast %0 : vector<1x64x32xf32> to vector<64x32xf32>
    %cst = arith.constant 1.000000e+00 : f32
    %2 = vector.broadcast %cst : f32 to vector<1x64xf32>
    %c0_2 = arith.constant 0 : index
    %c0_3 = arith.constant 0 : index
    %3 = vector.load %arg2[%c0_2, %c0_3] : memref<32x16xf32, #tpu.memory_space<vmem>>, vector<32x16xf32>
    %cst_4 = arith.constant dense<0.000000e+00> : vector<64x16xf32>
    %4 = tpu.matmul %1, %3, %cst_4 {dimension_numbers = #tpu.dot_dimension_numbers<[1], [0], [0], [1], [0, 0, 1, 1], [], []>} : vector<64x32xf32>, vector<32x16xf32>, vector<64x16xf32> -> vector<64x16xf32>
    %c0_5 = arith.constant 0 : index
    %c0_6 = arith.constant 0 : index
    %5 = vector.load %arg3[%c0_5, %c0_6] : memref<1x16xf32, #tpu.memory_space<vmem>>, vector<1x16xf32>
    %c0_7 = arith.constant 0 : index
    %c0_8 = arith.constant 0 : index
    %6 = vector.load %arg4[%c0_7, %c0_8] : memref<1x16xf32, #tpu.memory_space<vmem>>, vector<1x16xf32>
    %7 = arith.mulf %4, %4 : vector<64x16xf32>
    %8 = tpu.concatenate %4, %7 in 1 : vector<64x16xf32>, vector<64x16xf32> -> vector<64x32xf32>
    %cst_9 = arith.constant dense<0.000000e+00> : vector<1x32xf32>
    %9 = tpu.matmul %2, %8, %cst_9 {dimension_numbers = #tpu.dot_dimension_numbers<[1], [0], [0], [1], [0, 0, 1, 1], [], []>} : vector<1x64xf32>, vector<64x32xf32>, vector<1x32xf32> -> vector<1x32xf32>
    %10 = vector.extract_strided_slice %9 {offsets = [0, 0], sizes = [1, 16], strides = [1, 1]} : vector<1x32xf32> to vector<1x16xf32>
    %cst_10 = arith.constant 1.562500e-02 : f32
    %11 = vector.broadcast %cst_10 : f32 to vector<1x16xf32>
    %12 = arith.mulf %10, %11 : vector<1x16xf32>
    %13 = vector.extract_strided_slice %9 {offsets = [0, 16], sizes = [1, 16], strides = [1, 1]} : vector<1x32xf32> to vector<1x16xf32>
    %cst_11 = arith.constant 1.562500e-02 : f32
    %14 = vector.broadcast %cst_11 : f32 to vector<1x16xf32>
    %15 = arith.mulf %13, %14 : vector<1x16xf32>
    %16 = arith.mulf %12, %12 : vector<1x16xf32>
    %17 = arith.subf %15, %16 : vector<1x16xf32>
    %cst_12 = arith.constant 1.000000e-03 : f32
    %18 = vector.broadcast %cst_12 : f32 to vector<1x16xf32>
    %19 = arith.addf %17, %18 : vector<1x16xf32>
    %20 = math.rsqrt %19 : vector<1x16xf32>
    %21 = arith.mulf %5, %20 : vector<1x16xf32>
    %22 = arith.mulf %12, %21 : vector<1x16xf32>
    %23 = arith.subf %6, %22 : vector<1x16xf32>
    %24 = vector.broadcast %21 : vector<1x16xf32> to vector<64x16xf32>
    %25 = arith.mulf %4, %24 : vector<64x16xf32>
    %26 = vector.broadcast %23 : vector<1x16xf32> to vector<64x16xf32>
    %27 = arith.addf %25, %26 : vector<64x16xf32>
    %cst_13 = arith.constant 0.000000e+00 : f32
    %28 = vector.broadcast %cst_13 : f32 to vector<64x16xf32>
    %29 = arith.maximumf %27, %28 : vector<64x16xf32>
    %c0_14 = arith.constant 0 : index
    %c0_15 = arith.constant 0 : index
    %30 = vector.load %arg5[%c0_14, %c0_15] : memref<16x16xf32, #tpu.memory_space<vmem>>, vector<16x16xf32>
    %cst_16 = arith.constant dense<0.000000e+00> : vector<64x16xf32>
    %31 = tpu.matmul %29, %30, %cst_16 {dimension_numbers = #tpu.dot_dimension_numbers<[1], [0], [0], [1], [0, 0, 1, 1], [], []>} : vector<64x16xf32>, vector<16x16xf32>, vector<64x16xf32> -> vector<64x16xf32>
    %c0_17 = arith.constant 0 : index
    %c0_18 = arith.constant 0 : index
    %32 = vector.load %arg6[%c0_17, %c0_18] : memref<1x16xf32, #tpu.memory_space<vmem>>, vector<1x16xf32>
    %c0_19 = arith.constant 0 : index
    %c0_20 = arith.constant 0 : index
    %33 = vector.load %arg7[%c0_19, %c0_20] : memref<1x16xf32, #tpu.memory_space<vmem>>, vector<1x16xf32>
    %34 = arith.mulf %31, %31 : vector<64x16xf32>
    %35 = tpu.concatenate %31, %34 in 1 : vector<64x16xf32>, vector<64x16xf32> -> vector<64x32xf32>
    %cst_21 = arith.constant dense<0.000000e+00> : vector<1x32xf32>
    %36 = tpu.matmul %2, %35, %cst_21 {dimension_numbers = #tpu.dot_dimension_numbers<[1], [0], [0], [1], [0, 0, 1, 1], [], []>} : vector<1x64xf32>, vector<64x32xf32>, vector<1x32xf32> -> vector<1x32xf32>
    %37 = vector.extract_strided_slice %36 {offsets = [0, 0], sizes = [1, 16], strides = [1, 1]} : vector<1x32xf32> to vector<1x16xf32>
    %cst_22 = arith.constant 1.562500e-02 : f32
    %38 = vector.broadcast %cst_22 : f32 to vector<1x16xf32>
    %39 = arith.mulf %37, %38 : vector<1x16xf32>
    %40 = vector.extract_strided_slice %36 {offsets = [0, 16], sizes = [1, 16], strides = [1, 1]} : vector<1x32xf32> to vector<1x16xf32>
    %cst_23 = arith.constant 1.562500e-02 : f32
    %41 = vector.broadcast %cst_23 : f32 to vector<1x16xf32>
    %42 = arith.mulf %40, %41 : vector<1x16xf32>
    %43 = arith.mulf %39, %39 : vector<1x16xf32>
    %44 = arith.subf %42, %43 : vector<1x16xf32>
    %cst_24 = arith.constant 1.000000e-03 : f32
    %45 = vector.broadcast %cst_24 : f32 to vector<1x16xf32>
    %46 = arith.addf %44, %45 : vector<1x16xf32>
    %47 = math.rsqrt %46 : vector<1x16xf32>
    %48 = arith.mulf %32, %47 : vector<1x16xf32>
    %49 = arith.mulf %39, %48 : vector<1x16xf32>
    %50 = arith.subf %33, %49 : vector<1x16xf32>
    %51 = vector.broadcast %48 : vector<1x16xf32> to vector<64x16xf32>
    %52 = arith.mulf %31, %51 : vector<64x16xf32>
    %53 = vector.broadcast %50 : vector<1x16xf32> to vector<64x16xf32>
    %54 = arith.addf %52, %53 : vector<64x16xf32>
    %cst_25 = arith.constant 0.000000e+00 : f32
    %55 = vector.broadcast %cst_25 : f32 to vector<64x16xf32>
    %56 = arith.maximumf %54, %55 : vector<64x16xf32>
    %c0_26 = arith.constant 0 : index
    %c0_27 = arith.constant 0 : index
    %c0_28 = arith.constant 0 : index
    %57 = vector.load %arg8[%c0_26, %c0_27, %c0_28] : memref<1x64x16xf32, #tpu.memory_space<vmem>>, vector<1x64x16xf32>
    %58 = vector.shape_cast %57 : vector<1x64x16xf32> to vector<64x16xf32>
    %59 = vector.shape_cast %56 : vector<64x16xf32> to vector<1x64x16xf32>
    tpu.vector_store %arg8[%c0_26, %c0_27, %c0_28], %59 {strides = array<i32>} : memref<1x64x16xf32, #tpu.memory_space<vmem>>, vector<1x64x16xf32>,
    return
  }
  func.func @transform_0(%arg0: i32) -> (i32, i32, i32) {
    %c0_i32 = arith.constant 0 : i32
    %c0_i32_0 = arith.constant 0 : i32
    %c0_i32_1 = arith.constant 0 : i32
    return %arg0, %c0_i32, %c0_i32_0 : i32, i32, i32
  }
  func.func @transform_1(%arg0: i32) -> (i32, i32) {
    %c0_i32 = arith.constant 0 : i32
    %c0_i32_0 = arith.constant 0 : i32
    %c0_i32_1 = arith.constant 0 : i32
    return %c0_i32, %c0_i32_0 : i32, i32
  }
  func.func @transform_2(%arg0: i32) -> (i32, i32) {
    %c0_i32 = arith.constant 0 : i32
    %c0_i32_0 = arith.constant 0 : i32
    %c0_i32_1 = arith.constant 0 : i32
    return %c0_i32, %c0_i32_0 : i32, i32
  }
  func.func @transform_3(%arg0: i32) -> (i32, i32) {
    %c0_i32 = arith.constant 0 : i32
    %c0_i32_0 = arith.constant 0 : i32
    %c0_i32_1 = arith.constant 0 : i32
    return %c0_i32, %c0_i32_0 : i32, i32
  }
  func.func @transform_4(%arg0: i32) -> (i32, i32) {
    %c0_i32 = arith.constant 0 : i32
    %c0_i32_0 = arith.constant 0 : i32
    %c0_i32_1 = arith.constant 0 : i32
    return %c0_i32, %c0_i32_0 : i32, i32
  }
  func.func @transform_5(%arg0: i32) -> (i32, i32) {
    %c0_i32 = arith.constant 0 : i32
    %c0_i32_0 = arith.constant 0 : i32
    %c0_i32_1 = arith.constant 0 : i32
    return %c0_i32, %c0_i32_0 : i32, i32
  }
  func.func @transform_6(%arg0: i32) -> (i32, i32) {
    %c0_i32 = arith.constant 0 : i32
    %c0_i32_0 = arith.constant 0 : i32
    %c0_i32_1 = arith.constant 0 : i32
    return %c0_i32, %c0_i32_0 : i32, i32
  }
  func.func @transform_7(%arg0: i32) -> (i32, i32, i32) {
    %c0_i32 = arith.constant 0 : i32
    %c0_i32_0 = arith.constant 0 : i32
    %c0_i32_1 = arith.constant 0 : i32
    return %arg0, %c0_i32, %c0_i32_0 : i32, i32, i32
  }
}

</mosaic_0001>

<llo_original>
// kernel: tpu_custom_call.1
$region0: #{tpu_custom_call.1}
  #allocation0 [shape = 'u32[]', space=smem, size = 0x4, offset = 0x4, fixed_abs, tag = 'smem constant byte address 0x4 - core index']
  #allocation1 [shape = 'u32[144,128]{1,0:T(1,128)}', space=vmem, size = 0x12000, scoped, tag = 'internal scratch']
  %s0 = inlined_call_operand.vmem [shape: f32[8,64,32], index: 0, kind: input, shape index: {}]
  %s1 = inlined_call_operand.vmem [shape: f32[32,16], index: 1, kind: input, shape index: {}]
  %s2 = inlined_call_operand.vmem [shape: f32[1,16], index: 2, kind: input, shape index: {}]
  %s3 = inlined_call_operand.vmem [shape: f32[1,16], index: 3, kind: input, shape index: {}]
  %s4 = inlined_call_operand.vmem [shape: f32[16,16], index: 4, kind: input, shape index: {}]
  %s5 = inlined_call_operand.vmem [shape: f32[1,16], index: 5, kind: input, shape index: {}]
  %s6 = inlined_call_operand.vmem [shape: f32[1,16], index: 6, kind: input, shape index: {}]
  %s7 = inlined_call_operand.vmem [shape: f32[8,64,16], index: 7, kind: output, shape index: {}]
  %s8 = sld [smem:[#allocation0]]
  $region61: #{tpu_custom_call.1} parent=0
    _
  %s10 = ssub.s32 1, %s8
  %s11 = scalar_select 0, %s10, %s8
  loop: start=0, step=1, limit=10
  $region2: #{tpu_custom_call.1} parent=0 // loop_pre_header
    _
  $region3: #{tpu_custom_call.1} parent=0 // loop_header
    %s13 = sphi 0, %s17
    %p14 = scmp.ge.s32.totalorder %s13, 10
    %s23 = sphi 0, %s25
    %s26 = sphi 0, %s23
    %s27 = sphi 0, %s26
    %s43 = sphi 0, %s27
    %s47 = sphi 0, %s47
    %s49 = sphi 0, %s47
    %s50 = sphi 0, %s49
    %s64 = sphi 0, %s50
    %s68 = sphi 0, %s68
    %s70 = sphi 0, %s68
    %s71 = sphi 0, %s70
    %s85 = sphi 0, %s71
    %s89 = sphi 0, %s89
    %s91 = sphi 0, %s89
    %s92 = sphi 0, %s91
    %s106 = sphi 0, %s92
    %s110 = sphi 0, %s110
    %s112 = sphi 0, %s110
    %s113 = sphi 0, %s112
    %s127 = sphi 0, %s113
    %s131 = sphi 0, %s131
    %s133 = sphi 0, %s131
    %s134 = sphi 0, %s133
    %s148 = sphi 0, %s134
    %s152 = sphi 0, %s152
    %s154 = sphi 0, %s152
    %s155 = sphi 0, %s154
    %s169 = sphi 0, %s155
    %s175 = sphi 0, %s177
    %s178 = sphi 0, %s175
    %s179 = sphi 0, %s178
    %s195 = sphi 0, %s179
  $region4: #{tpu_custom_call.1} parent=0 // loop_header_branch
    %16 = sbr.rel (%p14) target = $region8
  $region5: #{tpu_custom_call.1} parent=0 // loop_body
    %s18 = ssub.s32 %s13, 1
    %s19 = ssub.s32 %s13, 2
    %s20 = sadd.s32 %s13, 1
    %s21 = ssub.s32 %s13, %s20
    %p22 = scmp.eq.s32.totalorder %s21, 0
    %s24 = sadd.s32 %s23, 1
    %s25 = scalar_select %p22, %s23, %s24
    %p28 = pneg %p22
    %p29 = scmp.eq.s32.totalorder %s13, 7
    %p30 = por %p28, %p29
    %p31 = scmp.ne.s32.totalorder %s23, %s26
    %p32 = scmp.eq.s32.totalorder %s13, 0
    %p33 = por %p31, %p32
    %p34 = scmp.ne.s32.totalorder %s23, %s26
    %p35 = scmp.eq.s32.totalorder %s18, 7
    %p36 = por %p34, %p35
    %p37 = scmp.ne.s32.totalorder %s26, %s27
    %p38 = scmp.eq.s32.totalorder %s18, 0
    %p39 = por %p37, %p38
    %p40 = scmp.ne.s32.totalorder %s26, %s27
    %p41 = scmp.eq.s32.totalorder %s19, 7
    %p42 = por %p40, %p41
    %p44 = scmp.ne.s32.totalorder %s27, %s43
    %p45 = scmp.eq.s32.totalorder %s19, 0
    %p46 = por %p44, %p45
    %s48 = sadd.s32 %s47, 1
    %p51 = scmp.eq.s32.totalorder %s13, 7
    %p52 = scmp.ne.s32.totalorder %s47, %s49
    %p53 = scmp.eq.s32.totalorder %s13, 0
    %p54 = por %p52, %p53
    %p55 = scmp.ne.s32.totalorder %s47, %s49
    %p56 = scmp.eq.s32.totalorder %s18, 7
    %p57 = por %p55, %p56
    %p58 = scmp.ne.s32.totalorder %s49, %s50
    %p59 = scmp.eq.s32.totalorder %s18, 0
    %p60 = por %p58, %p59
    %p61 = scmp.ne.s32.totalorder %s49, %s50
    %p62 = scmp.eq.s32.totalorder %s19, 7
    %p63 = por %p61, %p62
    %p65 = scmp.ne.s32.totalorder %s50, %s64
    %p66 = scmp.eq.s32.totalorder %s19, 0
    %p67 = por %p65, %p66
    %s69 = sadd.s32 %s68, 1
    %p72 = scmp.eq.s32.totalorder %s13, 7
    %p73 = scmp.ne.s32.totalorder %s68, %s70
    %p74 = scmp.eq.s32.totalorder %s13, 0
    %p75 = por %p73, %p74
    %p76 = scmp.ne.s32.totalorder %s68, %s70
    %p77 = scmp.eq.s32.totalorder %s18, 7
    %p78 = por %p76, %p77
    %p79 = scmp.ne.s32.totalorder %s70, %s71
    %p80 = scmp.eq.s32.totalorder %s18, 0
    %p81 = por %p79, %p80
    %p82 = scmp.ne.s32.totalorder %s70, %s71
    %p83 = scmp.eq.s32.totalorder %s19, 7
    %p84 = por %p82, %p83
    %p86 = scmp.ne.s32.totalorder %s71, %s85
    %p87 = scmp.eq.s32.totalorder %s19, 0
    %p88 = por %p86, %p87
    %s90 = sadd.s32 %s89, 1
    %p93 = scmp.eq.s32.totalorder %s13, 7
    %p94 = scmp.ne.s32.totalorder %s89, %s91
    %p95 = scmp.eq.s32.totalorder %s13, 0
    %p96 = por %p94, %p95
    %p97 = scmp.ne.s32.totalorder %s89, %s91
    %p98 = scmp.eq.s32.totalorder %s18, 7
    %p99 = por %p97, %p98
    %p100 = scmp.ne.s32.totalorder %s91, %s92
    %p101 = scmp.eq.s32.totalorder %s18, 0
    %p102 = por %p100, %p101
    %p103 = scmp.ne.s32.totalorder %s91, %s92
    %p104 = scmp.eq.s32.totalorder %s19, 7
    %p105 = por %p103, %p104
    %p107 = scmp.ne.s32.totalorder %s92, %s106
    %p108 = scmp.eq.s32.totalorder %s19, 0
    %p109 = por %p107, %p108
    %s111 = sadd.s32 %s110, 1
    %p114 = scmp.eq.s32.totalorder %s13, 7
    %p115 = scmp.ne.s32.totalorder %s110, %s112
    %p116 = scmp.eq.s32.totalorder %s13, 0
    %p117 = por %p115, %p116
    %p118 = scmp.ne.s32.totalorder %s110, %s112
    %p119 = scmp.eq.s32.totalorder %s18, 7
    %p120 = por %p118, %p119
    %p121 = scmp.ne.s32.totalorder %s112, %s113
    %p122 = scmp.eq.s32.totalorder %s18, 0
    %p123 = por %p121, %p122
    %p124 = scmp.ne.s32.totalorder %s112, %s113
    %p125 = scmp.eq.s32.totalorder %s19, 7
    %p126 = por %p124, %p125
    %p128 = scmp.ne.s32.totalorder %s113, %s127
    %p129 = scmp.eq.s32.totalorder %s19, 0
    %p130 = por %p128, %p129
    %s132 = sadd.s32 %s131, 1
    %p135 = scmp.eq.s32.totalorder %s13, 7
    %p136 = scmp.ne.s32.totalorder %s131, %s133
    %p137 = scmp.eq.s32.totalorder %s13, 0
    %p138 = por %p136, %p137
    %p139 = scmp.ne.s32.totalorder %s131, %s133
    %p140 = scmp.eq.s32.totalorder %s18, 7
    %p141 = por %p139, %p140
    %p142 = scmp.ne.s32.totalorder %s133, %s134
    %p143 = scmp.eq.s32.totalorder %s18, 0
    %p144 = por %p142, %p143
    %p145 = scmp.ne.s32.totalorder %s133, %s134
    %p146 = scmp.eq.s32.totalorder %s19, 7
    %p147 = por %p145, %p146
    %p149 = scmp.ne.s32.totalorder %s134, %s148
    %p150 = scmp.eq.s32.totalorder %s19, 0
    %p151 = por %p149, %p150
    %s153 = sadd.s32 %s152, 1
    %p156 = scmp.eq.s32.totalorder %s13, 7
    %p157 = scmp.ne.s32.totalorder %s152, %s154
    %p158 = scmp.eq.s32.totalorder %s13, 0
    %p159 = por %p157, %p158
    %p160 = scmp.ne.s32.totalorder %s152, %s154
    %p161 = scmp.eq.s32.totalorder %s18, 7
    %p162 = por %p160, %p161
    %p163 = scmp.ne.s32.totalorder %s154, %s155
    %p164 = scmp.eq.s32.totalorder %s18, 0
    %p165 = por %p163, %p164
    %p166 = scmp.ne.s32.totalorder %s154, %s155
    %p167 = scmp.eq.s32.totalorder %s19, 7
    %p168 = por %p166, %p167
    %p170 = scmp.ne.s32.totalorder %s155, %s169
    %p171 = scmp.eq.s32.totalorder %s19, 0
    %p172 = por %p170, %p171
    %s173 = ssub.s32 %s13, %s20
    %p174 = scmp.eq.s32.totalorder %s173, 0
    %s176 = sadd.s32 %s175, 1
    %s177 = scalar_select %p174, %s175, %s176
    %p180 = pneg %p174
    %p181 = scmp.eq.s32.totalorder %s13, 7
    %p182 = por %p180, %p181
    %p183 = scmp.ne.s32.totalorder %s175, %s178
    %p184 = scmp.eq.s32.totalorder %s13, 0
    %p185 = por %p183, %p184
    %p186 = scmp.ne.s32.totalorder %s175, %s178
    %p187 = scmp.eq.s32.totalorder %s18, 7
    %p188 = por %p186, %p187
    %p189 = scmp.ne.s32.totalorder %s178, %s179
    %p190 = scmp.eq.s32.totalorder %s18, 0
    %p191 = por %p189, %p190
    %p192 = scmp.ne.s32.totalorder %s178, %s179
    %p193 = scmp.eq.s32.totalorder %s19, 7
    %p194 = por %p192, %p193
    %p196 = scmp.ne.s32.totalorder %s179, %s195
    %p197 = scmp.eq.s32.totalorder %s19, 0
    %p198 = por %p196, %p197
    %p199 = scmp.le.s32.totalorder 1, %s13
    %p200 = scmp.lt.s32.totalorder %s13, 9
    %p201 = pnand %p199, %p200
    %p202 = pneg %p201
    // Predicated region
    $region9: #{tpu_custom_call.1} parent=5 // pred_check
      _
    $region10: #{tpu_custom_call.1} parent=5 // pred_check_branch
      %204 = sbr.rel (%p201) target = $region12
    $region11: #{tpu_custom_call.1} parent=5 // pred_region
      %s205 = ssub.s32 %s13, 1
      // Predicated region
      $region13: #{tpu_custom_call.1} parent=11 // pred_check
        %p206 = pneg %p60
      $region14: #{tpu_custom_call.1} parent=11 // pred_check_branch
        %208 = sbr.rel (%p206) target = $region16
      $region15: #{tpu_custom_call.1} parent=11 // pred_region
        _
      $region16: #{tpu_custom_call.1} parent=11 // pred_fallthru
        _
      // Predicated region
      $region17: #{tpu_custom_call.1} parent=11 // pred_check
        %p209 = pneg %p81
      $region18: #{tpu_custom_call.1} parent=11 // pred_check_branch
        %211 = sbr.rel (%p209) target = $region20
      $region19: #{tpu_custom_call.1} parent=11 // pred_region
        _
      $region20: #{tpu_custom_call.1} parent=11 // pred_fallthru
        _
      // Predicated region
      $region21: #{tpu_custom_call.1} parent=11 // pred_check
        %p212 = pneg %p102
      $region22: #{tpu_custom_call.1} parent=11 // pred_check_branch
        %214 = sbr.rel (%p212) target = $region24
      $region23: #{tpu_custom_call.1} parent=11 // pred_region
        _
      $region24: #{tpu_custom_call.1} parent=11 // pred_fallthru
        _
      // Predicated region
      $region25: #{tpu_custom_call.1} parent=11 // pred_check
        %p215 = pneg %p123
      $region26: #{tpu_custom_call.1} parent=11 // pred_check_branch
        %217 = sbr.rel (%p215) target = $region28
      $region27: #{tpu_custom_call.1} parent=11 // pred_region
        _
      $region28: #{tpu_custom_call.1} parent=11 // pred_fallthru
        _
      // Predicated region
      $region29: #{tpu_custom_call.1} parent=11 // pred_check
        %p218 = pneg %p144
      $region30: #{tpu_custom_call.1} parent=11 // pred_check_branch
        %220 = sbr.rel (%p218) target = $region32
      $region31: #{tpu_custom_call.1} parent=11 // pred_region
        _
      $region32: #{tpu_custom_call.1} parent=11 // pred_fallthru
        _
      // Predicated region
      $region33: #{tpu_custom_call.1} parent=11 // pred_check
        %p221 = pneg %p165
      $region34: #{tpu_custom_call.1} parent=11 // pred_check_branch
        %223 = sbr.rel (%p221) target = $region36
      $region35: #{tpu_custom_call.1} parent=11 // pred_region
        _
      $region36: #{tpu_custom_call.1} parent=11 // pred_fallthru
        _
    $region12: #{tpu_custom_call.1} parent=5 // pred_fallthru
      _
    %p224 = scmp.lt.s32.totalorder %s13, 8
    // Predicated region
    $region37: #{tpu_custom_call.1} parent=5 // pred_check
      %p225 = pneg %p224
    $region38: #{tpu_custom_call.1} parent=5 // pred_check_branch
      %227 = sbr.rel (%p225) target = $region40
    $region39: #{tpu_custom_call.1} parent=5 // pred_region
      // Predicated region
      $region41: #{tpu_custom_call.1} parent=39 // pred_check
        %p228 = pneg %p33
      $region42: #{tpu_custom_call.1} parent=39 // pred_check_branch
        %230 = sbr.rel (%p228) target = $region44
      $region43: #{tpu_custom_call.1} parent=39 // pred_region
        %p231 = scmp.lt.s32.totalorder %s13, 7
        %s232 = scalar_select %p231, %s13, 7
        %s233 = smul.addr %s232, 8
        %s234 = smul.addr %s233, 8
        %s235 = scalar_lea.vmem %s0, %s234
      $region44: #{tpu_custom_call.1} parent=39 // pred_fallthru
        _
    $region40: #{tpu_custom_call.1} parent=5 // pred_fallthru
      _
    %p236 = scmp.le.s32.totalorder 1, %s13
    %p237 = scmp.lt.s32.totalorder %s13, 9
    %p238 = pnand %p236, %p237
    %p239 = pneg %p238
    // Predicated region
    $region45: #{tpu_custom_call.1} parent=5 // pred_check
      _
    $region46: #{tpu_custom_call.1} parent=5 // pred_check_branch
      %241 = sbr.rel (%p238) target = $region48
    $region47: #{tpu_custom_call.1} parent=5 // pred_region
      %s242 = ssub.s32 %s13, 1
      %p243 = scmp.lt.s32.totalorder %s18, 7
      %s244 = scalar_select %p243, %s18, 7
      %s245 = smul.addr %s244, 8
      %s246 = smul.addr %s245, 8
      %s247 = scalar_lea.vmem %s0, %s246
      %p248 = pneg %p39
      %p249 = pneg %p36
      %p250 = pneg %p60
      %p251 = pneg %p57
      %p252 = pneg %p81
      %p253 = pneg %p78
      %p254 = pneg %p102
      %p255 = pneg %p99
      %p256 = pneg %p123
      %p257 = pneg %p120
      %p258 = pneg %p144
      %p259 = pneg %p141
      %p260 = pneg %p165
      %p261 = pneg %p162
      %p262 = pneg %p191
      %p263 = pneg %p188
      %p264 = scmp.lt.s32.totalorder %s18, 7
      %s265 = scalar_select %p264, %s18, 7
      %s266 = smul.addr %s265, 8
      %s267 = smul.addr %s266, 8
      %s268 = scalar_lea.vmem %s7, %s267
      %p269 = scmp.lt.s32.totalorder %s18, 7
      %s270 = scalar_select %p269, %s18, 7
      %s271 = smul.addr %s270, 8
      %s272 = smul.addr %s271, 8
      %s273 = scalar_lea.vmem %s0, %s272
      %p274 = scmp.lt.s32.totalorder %s18, 7
      %s275 = scalar_select %p274, %s18, 7
      %s276 = smul.addr %s275, 8
      %s277 = smul.addr %s276, 8
      %s278 = scalar_lea.vmem %s7, %s277
      %v279 = vld [vmem:[%s273] sm:$0xff]
      %v280 = vld [vmem:[%s273 + $0x8] sm:$0xff]
      %v281 = vld [vmem:[%s273 + $0x10] sm:$0xff]
      %v282 = vld [vmem:[%s273 + $0x18] sm:$0xff]
      %v283 = vld [vmem:[%s273 + $0x20] sm:$0xff]
      %v284 = vld [vmem:[%s273 + $0x28] sm:$0xff]
      %v285 = vld [vmem:[%s273 + $0x30] sm:$0xff]
      %v286 = vld [vmem:[%s273 + $0x38] sm:$0xff]
      %v287 = vld [vmem:[%s1] sm:$0xff]
      %v288 = vld [vmem:[%s1 + $0x8] sm:$0xff]
      %v289 = vld [vmem:[%s1 + $0x10] sm:$0xff]
      %v290 = vld [vmem:[%s1 + $0x18] sm:$0xff]
      %vm291 = vcmask 261120
      %v293 = vsel %vm291, %v279, 0
      %v296 = vsel %vm291, %v280, 0
      %v299 = vsel %vm291, %v281, 0
      %v302 = vsel %vm291, %v282, 0
      %v305 = vsel %vm291, %v283, 0
      %v308 = vsel %vm291, %v284, 0
      %v311 = vsel %vm291, %v285, 0
      %v314 = vsel %vm291, %v286, 0
      %316 = vmatprep.subr.mxu0 0.0
      %317 = vmatpush1.msra.mxu0 %v287
      %318 = vmatprep.subr.mxu0 0.0
      %319 = vmatpush1.msra.mxu0 %v288
      %320 = vmatprep.subr.mxu0 0.0
      %321 = vmatpush1.msra.mxu0 %v289
      %322 = vmatprep.subr.mxu0 0.0
      %323 = vmatpush1.msra.mxu0 %v290
      %324 = vmatprep.subr.mxu0 0.0
      %325 = vmatpush1.msra.mxu0 0.0
      %326 = vmatprep.subr.mxu0 0.0
      %327 = vmatpush1.msra.mxu0 0.0
      %328 = vmatprep.subr.mxu0 0.0
      %329 = vmatpush1.msra.mxu0 0.0
      %330 = vmatprep.subr.mxu0 0.0
      %331 = vmatpush1.msra.mxu0 0.0
      %332 = vmatprep.subr.mxu0 0.0
      %333 = vmatpush1.msra.mxu0 0.0
      %334 = vmatprep.subr.mxu0 0.0
      %335 = vmatpush1.msra.mxu0 0.0
      %336 = vmatprep.subr.mxu0 0.0
      %337 = vmatpush1.msra.mxu0 0.0
      %338 = vmatprep.subr.mxu0 0.0
      %339 = vmatpush1.msra.mxu0 0.0
      %340 = vmatprep.subr.mxu0 0.0
      %341 = vmatpush1.msra.mxu0 0.0
      %342 = vmatprep.subr.mxu0 0.0
      %343 = vmatpush1.msra.mxu0 0.0
      %344 = vmatprep.subr.mxu0 0.0
      %345 = vmatpush1.msra.mxu0 0.0
      %346 = vmatprep.subr.mxu0 0.0
      %347 = vmatpush1.msra.mxu0 0.0
      %348 = vmatprep.subr.mxu0 0.0
      %349 = vmatpush1.msra.mxu0 0.0
      %350 = vmatprep.subr.mxu0 0.0
      %351 = vmatpush1.msra.mxu0 0.0
      %352 = vmatprep.subr.mxu0 0.0
      %353 = vmatpush1.msra.mxu0 0.0
      %354 = vmatprep.subr.mxu0 0.0
      %355 = vmatpush1.msra.mxu0 0.0
      %356 = vmatprep.subr.mxu0 0.0
      %357 = vmatpush1.msra.mxu0 0.0
      %358 = vmatprep.subr.mxu0 0.0
      %359 = vmatpush1.msra.mxu0 0.0
      %360 = vmatprep.subr.mxu0 0.0
      %361 = vmatpush1.msra.mxu0 0.0
      %362 = vmatprep.subr.mxu0 0.0
      %363 = vmatpush1.msra.mxu0 0.0
      %364 = vmatprep.subr.mxu0 0.0
      %365 = vmatpush1.msra.mxu0 0.0
      %366 = vmatprep.subr.mxu0 0.0
      %367 = vmatpush1.msra.mxu0 0.0
      %368 = vmatprep.subr.mxu0 0.0
      %369 = vmatpush1.msra.mxu0 0.0
      %370 = vmatprep.subr.mxu0 0.0
      %371 = vmatpush1.msra.mxu0 0.0
      %372 = vmatprep.subr.mxu0 0.0
      %373 = vmatpush1.msra.mxu0 0.0
      %374 = vmatprep.subr.mxu0 0.0
      %375 = vmatpush1.msra.mxu0 0.0
      %376 = vmatprep.subr.mxu0 0.0
      %377 = vmatpush1.msra.mxu0 0.0
      %378 = vmatprep.subr.mxu0 0.0
      %379 = vmatpush1.msra.mxu0 0.0
      %380 = vmatprep.mubr.f32.mxu0 0.0
      %381 = vmatmul.mubr.f32.gmra.mrb[0].mxu0 %v293
      %v382 = vpop.f32.mrb[0].mxu0
      %v383 = vadd.f32 0.0, %v382
      %v384 = vpop.f32.mrb[0].mxu0
      %385 = vmatprep.mubr.f32.mxu0 0.0
      %386 = vmatmul.mubr.f32.gmra.mrb[0].mxu0 %v296
      %v387 = vpop.f32.mrb[0].mxu0
      %v388 = vadd.f32 0.0, %v387
      %v389 = vpop.f32.mrb[0].mxu0
      %390 = vmatprep.mubr.f32.mxu0 0.0
      %391 = vmatmul.mubr.f32.gmra.mrb[0].mxu0 %v299
      %v392 = vpop.f32.mrb[0].mxu0
      %v393 = vadd.f32 0.0, %v392
      %v394 = vpop.f32.mrb[0].mxu0
      %395 = vmatprep.mubr.f32.mxu0 0.0
      %396 = vmatmul.mubr.f32.gmra.mrb[0].mxu0 %v302
      %v397 = vpop.f32.mrb[0].mxu0
      %v398 = vadd.f32 0.0, %v397
      %v399 = vpop.f32.mrb[0].mxu0
      %400 = vmatprep.mubr.f32.mxu0 0.0
      %401 = vmatmul.mubr.f32.gmra.mrb[0].mxu0 %v305
      %v402 = vpop.f32.mrb[0].mxu0
      %v403 = vadd.f32 0.0, %v402
      %v404 = vpop.f32.mrb[0].mxu0
      %405 = vmatprep.mubr.f32.mxu0 0.0
      %406 = vmatmul.mubr.f32.gmra.mrb[0].mxu0 %v308
      %v407 = vpop.f32.mrb[0].mxu0
      %v408 = vadd.f32 0.0, %v407
      %v409 = vpop.f32.mrb[0].mxu0
      %410 = vmatprep.mubr.f32.mxu0 0.0
      %411 = vmatmul.mubr.f32.gmra.mrb[0].mxu0 %v311
      %v412 = vpop.f32.mrb[0].mxu0
      %v413 = vadd.f32 0.0, %v412
      %v414 = vpop.f32.mrb[0].mxu0
      %415 = vmatprep.mubr.f32.mxu0 0.0
      %416 = vmatmul.mubr.f32.gmra.mrb[0].mxu0 %v314
      %v417 = vpop.f32.mrb[0].mxu0
      %v418 = vadd.f32 0.0, %v417
      %v419 = vpop.f32.mrb[0].mxu0
      %420 = vdwg.mxu0
      %v421 = vld [vmem:[%s2] sm:$0x1]
      %v422 = vld [vmem:[%s3] sm:$0x1]
      %v423 = vmul.f32 %v383, %v383
      %v424 = vmul.f32 %v388, %v388
      %v425 = vmul.f32 %v393, %v393
      %v426 = vmul.f32 %v398, %v398
      %v427 = vmul.f32 %v403, %v403
      %v428 = vmul.f32 %v408, %v408
      %v429 = vmul.f32 %v413, %v413
      %v430 = vmul.f32 %v418, %v418
      %439 = vrot.lane.b32.xlu0 %v423, 16
      %v440 = vpop.permute.xlu0 %439
      %441 = vrot.lane.b32.xlu0 %v424, 16
      %v442 = vpop.permute.xlu0 %441
      %443 = vrot.lane.b32.xlu0 %v425, 16
      %v444 = vpop.permute.xlu0 %443
      %445 = vrot.lane.b32.xlu0 %v426, 16
      %v446 = vpop.permute.xlu0 %445
      %447 = vrot.lane.b32.xlu0 %v427, 16
      %v448 = vpop.permute.xlu0 %447
      %449 = vrot.lane.b32.xlu0 %v428, 16
      %v450 = vpop.permute.xlu0 %449
      %451 = vrot.lane.b32.xlu0 %v429, 16
      %v452 = vpop.permute.xlu0 %451
      %453 = vrot.lane.b32.xlu0 %v430, 16
      %v454 = vpop.permute.xlu0 %453
      %vm463 = vcmask 130048
      %v464 = vsel %vm463, %v383, %v440
      %v465 = vsel %vm463, %v388, %v442
      %v466 = vsel %vm463, %v393, %v444
      %v467 = vsel %vm463, %v398, %v446
      %v468 = vsel %vm463, %v403, %v448
      %v469 = vsel %vm463, %v408, %v450
      %v470 = vsel %vm463, %v413, %v452
      %v471 = vsel %vm463, %v418, %v454
      %vm472 = vcmask 523264
      %v474 = vsel %vm472, 1.0, 0
      %476 = vmatprep.subr.mxu0 0.0
      %477 = vmatpush1.msra.mxu0 %v464
      %478 = vmatprep.subr.mxu0 0.0
      %479 = vmatpush1.msra.mxu0 %v465
      %480 = vmatprep.subr.mxu0 0.0
      %481 = vmatpush1.msra.mxu0 %v466
      %482 = vmatprep.subr.mxu0 0.0
      %483 = vmatpush1.msra.mxu0 %v467
      %484 = vmatprep.subr.mxu0 0.0
      %485 = vmatpush1.msra.mxu0 %v468
      %486 = vmatprep.subr.mxu0 0.0
      %487 = vmatpush1.msra.mxu0 %v469
      %488 = vmatprep.subr.mxu0 0.0
      %489 = vmatpush1.msra.mxu0 %v470
      %490 = vmatprep.subr.mxu0 0.0
      %491 = vmatpush1.msra.mxu0 %v471
      %492 = vmatprep.subr.mxu0 0.0
      %493 = vmatpush1.msra.mxu0 0.0
      %494 = vmatprep.subr.mxu0 0.0
      %495 = vmatpush1.msra.mxu0 0.0
      %496 = vmatprep.subr.mxu0 0.0
      %497 = vmatpush1.msra.mxu0 0.0
      %498 = vmatprep.subr.mxu0 0.0
      %499 = vmatpush1.msra.mxu0 0.0
      %500 = vmatprep.subr.mxu0 0.0
      %501 = vmatpush1.msra.mxu0 0.0
      %502 = vmatprep.subr.mxu0 0.0
      %503 = vmatpush1.msra.mxu0 0.0
      %504 = vmatprep.subr.mxu0 0.0
      %505 = vmatpush1.msra.mxu0 0.0
      %506 = vmatprep.subr.mxu0 0.0
      %507 = vmatpush1.msra.mxu0 0.0
      %508 = vmatprep.subr.mxu0 0.0
      %509 = vmatpush1.msra.mxu0 0.0
      %510 = vmatprep.subr.mxu0 0.0
      %511 = vmatpush1.msra.mxu0 0.0
      %512 = vmatprep.subr.mxu0 0.0
      %513 = vmatpush1.msra.mxu0 0.0
      %514 = vmatprep.subr.mxu0 0.0
      %515 = vmatpush1.msra.mxu0 0.0
      %516 = vmatprep.subr.mxu0 0.0
      %517 = vmatpush1.msra.mxu0 0.0
      %518 = vmatprep.subr.mxu0 0.0
      %519 = vmatpush1.msra.mxu0 0.0
      %520 = vmatprep.subr.mxu0 0.0
      %521 = vmatpush1.msra.mxu0 0.0
      %522 = vmatprep.subr.mxu0 0.0
      %523 = vmatpush1.msra.mxu0 0.0
      %524 = vmatprep.subr.mxu0 0.0
      %525 = vmatpush1.msra.mxu0 0.0
      %526 = vmatprep.subr.mxu0 0.0
      %527 = vmatpush1.msra.mxu0 0.0
      %528 = vmatprep.subr.mxu0 0.0
      %529 = vmatpush1.msra.mxu0 0.0
      %530 = vmatprep.subr.mxu0 0.0
      %531 = vmatpush1.msra.mxu0 0.0
      %532 = vmatprep.subr.mxu0 0.0
      %533 = vmatpush1.msra.mxu0 0.0
      %534 = vmatprep.subr.mxu0 0.0
      %535 = vmatpush1.msra.mxu0 0.0
      %536 = vmatprep.subr.mxu0 0.0
      %537 = vmatpush1.msra.mxu0 0.0
      %538 = vmatprep.subr.mxu0 0.0
      %539 = vmatpush1.msra.mxu0 0.0
      %540 = vmatprep.mubr.f32.mxu0 0.0
      %541 = vmatmul.mubr.f32.gmra.mrb[0].mxu0 %v474
      %v542 = vpop.f32.mrb[0].mxu0
      %v543 = vadd.f32 0.0, %v542
      %v544 = vpop.f32.mrb[0].mxu0
      %545 = vdwg.mxu0
      %v546 = vmul.f32 %v543, 0.015625
      %v547 = vmul.f32 %v546, %v546
      %549 = vrot.lane.b32.xlu0 %v547, 16
      %v550 = vpop.permute.xlu0 %549
      %v552 = vsub.f32 %v546, %v550
      %v553 = vadd.f32 %v552, 0.001
      %v554 = vrsqrt.pop %v553
      %v557 = vunpack.c.l.s4 1966171168
      %v558 = vunpack.c.0.s8 %v557
      %v559 = vlaneseq
      %v560 = vshrl.u32 %v559, 7
      %v561 = vsub.s32 %v558, %v560
      %v562 = vrot.slane %v554, %v561
      %v564 = vunpack.c.l.s4 1966171168
      %v565 = vunpack.c.0.s8 %v564
      %v566 = vlaneseq
      %v567 = vshrl.u32 %v566, 7
      %v568 = vsub.s32 %v565, %v567
      %v569 = vrot.slane %v562, %v568
      %570 = vrot.lane.b32.xlu0 %v569, 112
      %v571 = vpop.permute.xlu0 %570
      %v573 = vmul.f32 %v421, %v571
      %v574 = vmul.f32 %v546, %v573
      %v575 = vsub.f32 %v422, %v574
      %v577 = vlaneseq
      %v578 = vshrl.u32 %v577, 7
      %v579 = vsub.s32 0, %v578
      %v580 = vrot.slane %v573, %v579
      %v582 = vmul.f32 %v383, %v580
      %v583 = vmul.f32 %v388, %v580
      %v584 = vmul.f32 %v393, %v580
      %v585 = vmul.f32 %v398, %v580
      %v586 = vmul.f32 %v403, %v580
      %v587 = vmul.f32 %v408, %v580
      %v588 = vmul.f32 %v413, %v580
      %v589 = vmul.f32 %v418, %v580
      %v591 = vlaneseq
      %v592 = vshrl.u32 %v591, 7
      %v593 = vsub.s32 0, %v592
      %v594 = vrot.slane %v575, %v593
      %v596 = vadd.f32 %v582, %v594
      %v597 = vadd.f32 %v583, %v594
      %v598 = vadd.f32 %v584, %v594
      %v599 = vadd.f32 %v585, %v594
      %v600 = vadd.f32 %v586, %v594
      %v601 = vadd.f32 %v587, %v594
      %v602 = vadd.f32 %v588, %v594
      %v603 = vadd.f32 %v589, %v594
      %v604 = vmax.f32 %v596, 0.0
      %v605 = vmax.f32 %v597, 0.0
      %v606 = vmax.f32 %v598, 0.0
      %v607 = vmax.f32 %v599, 0.0
      %v608 = vmax.f32 %v600, 0.0
      %v609 = vmax.f32 %v601, 0.0
      %v610 = vmax.f32 %v602, 0.0
      %v611 = vmax.f32 %v603, 0.0
      %v612 = vld [vmem:[%s4] sm:$0xff]
      %v613 = vld [vmem:[%s4 + $0x8] sm:$0xff]
      %v615 = vsel %vm463, %v604, 0
      %v618 = vsel %vm463, %v605, 0
      %v621 = vsel %vm463, %v606, 0
      %v624 = vsel %vm463, %v607, 0
      %v627 = vsel %vm463, %v608, 0
      %v630 = vsel %vm463, %v609, 0
      %v633 = vsel %vm463, %v610, 0
      %v636 = vsel %vm463, %v611, 0
      %638 = vmatprep.subr.mxu0 0.0
      %639 = vmatpush1.msra.mxu0 %v612
      %640 = vmatprep.subr.mxu0 0.0
      %641 = vmatpush1.msra.mxu0 %v613
      %642 = vmatprep.subr.mxu0 0.0
      %643 = vmatpush1.msra.mxu0 0.0
      %644 = vmatprep.subr.mxu0 0.0
      %645 = vmatpush1.msra.mxu0 0.0
      %646 = vmatprep.subr.mxu0 0.0
      %647 = vmatpush1.msra.mxu0 0.0
      %648 = vmatprep.subr.mxu0 0.0
      %649 = vmatpush1.msra.mxu0 0.0
      %650 = vmatprep.subr.mxu0 0.0
      %651 = vmatpush1.msra.mxu0 0.0
      %652 = vmatprep.subr.mxu0 0.0
      %653 = vmatpush1.msra.mxu0 0.0
      %654 = vmatprep.subr.mxu0 0.0
      %655 = vmatpush1.msra.mxu0 0.0
      %656 = vmatprep.subr.mxu0 0.0
      %657 = vmatpush1.msra.mxu0 0.0
      %658 = vmatprep.subr.mxu0 0.0
      %659 = vmatpush1.msra.mxu0 0.0
      %660 = vmatprep.subr.mxu0 0.0
      %661 = vmatpush1.msra.mxu0 0.0
      %662 = vmatprep.subr.mxu0 0.0
      %663 = vmatpush1.msra.mxu0 0.0
      %664 = vmatprep.subr.mxu0 0.0
      %665 = vmatpush1.msra.mxu0 0.0
      %666 = vmatprep.subr.mxu0 0.0
      %667 = vmatpush1.msra.mxu0 0.0
      %668 = vmatprep.subr.mxu0 0.0
      %669 = vmatpush1.msra.mxu0 0.0
      %670 = vmatprep.subr.mxu0 0.0
      %671 = vmatpush1.msra.mxu0 0.0
      %672 = vmatprep.subr.mxu0 0.0
      %673 = vmatpush1.msra.mxu0 0.0
      %674 = vmatprep.subr.mxu0 0.0
      %675 = vmatpush1.msra.mxu0 0.0
      %676 = vmatprep.subr.mxu0 0.0
      %677 = vmatpush1.msra.mxu0 0.0
      %678 = vmatprep.subr.mxu0 0.0
      %679 = vmatpush1.msra.mxu0 0.0
      %680 = vmatprep.subr.mxu0 0.0
      %681 = vmatpush1.msra.mxu0 0.0
      %682 = vmatprep.subr.mxu0 0.0
      %683 = vmatpush1.msra.mxu0 0.0
      %684 = vmatprep.subr.mxu0 0.0
      %685 = vmatpush1.msra.mxu0 0.0
      %686 = vmatprep.subr.mxu0 0.0
      %687 = vmatpush1.msra.mxu0 0.0
      %688 = vmatprep.subr.mxu0 0.0
      %689 = vmatpush1.msra.mxu0 0.0
      %690 = vmatprep.subr.mxu0 0.0
      %691 = vmatpush1.msra.mxu0 0.0
      %692 = vmatprep.subr.mxu0 0.0
      %693 = vmatpush1.msra.mxu0 0.0
      %694 = vmatprep.subr.mxu0 0.0
      %695 = vmatpush1.msra.mxu0 0.0
      %696 = vmatprep.subr.mxu0 0.0
      %697 = vmatpush1.msra.mxu0 0.0
      %698 = vmatprep.subr.mxu0 0.0
      %699 = vmatpush1.msra.mxu0 0.0
      %700 = vmatprep.subr.mxu0 0.0
      %701 = vmatpush1.msra.mxu0 0.0
      %702 = vmatprep.mubr.f32.mxu0 0.0
      %703 = vmatmul.mubr.f32.gmra.mrb[0].mxu0 %v615
      %v704 = vpop.f32.mrb[0].mxu0
      %v705 = vadd.f32 0.0, %v704
      %v706 = vpop.f32.mrb[0].mxu0
      %707 = vmatprep.mubr.f32.mxu0 0.0
      %708 = vmatmul.mubr.f32.gmra.mrb[0].mxu0 %v618
      %v709 = vpop.f32.mrb[0].mxu0
      %v710 = vadd.f32 0.0, %v709
      %v711 = vpop.f32.mrb[0].mxu0
      %712 = vmatprep.mubr.f32.mxu0 0.0
      %713 = vmatmul.mubr.f32.gmra.mrb[0].mxu0 %v621
      %v714 = vpop.f32.mrb[0].mxu0
      %v715 = vadd.f32 0.0, %v714
      %v716 = vpop.f32.mrb[0].mxu0
      %717 = vmatprep.mubr.f32.mxu0 0.0
      %718 = vmatmul.mubr.f32.gmra.mrb[0].mxu0 %v624
      %v719 = vpop.f32.mrb[0].mxu0
      %v720 = vadd.f32 0.0, %v719
      %v721 = vpop.f32.mrb[0].mxu0
      %722 = vmatprep.mubr.f32.mxu0 0.0
      %723 = vmatmul.mubr.f32.gmra.mrb[0].mxu0 %v627
      %v724 = vpop.f32.mrb[0].mxu0
      %v725 = vadd.f32 0.0, %v724
      %v726 = vpop.f32.mrb[0].mxu0
      %727 = vmatprep.mubr.f32.mxu0 0.0
      %728 = vmatmul.mubr.f32.gmra.mrb[0].mxu0 %v630
      %v729 = vpop.f32.mrb[0].mxu0
      %v730 = vadd.f32 0.0, %v729
      %v731 = vpop.f32.mrb[0].mxu0
      %732 = vmatprep.mubr.f32.mxu0 0.0
      %733 = vmatmul.mubr.f32.gmra.mrb[0].mxu0 %v633
      %v734 = vpop.f32.mrb[0].mxu0
      %v735 = vadd.f32 0.0, %v734
      %v736 = vpop.f32.mrb[0].mxu0
      %737 = vmatprep.mubr.f32.mxu0 0.0
      %738 = vmatmul.mubr.f32.gmra.mrb[0].mxu0 %v636
      %v739 = vpop.f32.mrb[0].mxu0
      %v740 = vadd.f32 0.0, %v739
      %v741 = vpop.f32.mrb[0].mxu0
      %742 = vdwg.mxu0
      %v743 = vld [vmem:[%s5] sm:$0x1]
      %v744 = vld [vmem:[%s6] sm:$0x1]
      %v745 = vmul.f32 %v705, %v705
      %v746 = vmul.f32 %v710, %v710
      %v747 = vmul.f32 %v715, %v715
      %v748 = vmul.f32 %v720, %v720
      %v749 = vmul.f32 %v725, %v725
      %v750 = vmul.f32 %v730, %v730
      %v751 = vmul.f32 %v735, %v735
      %v752 = vmul.f32 %v740, %v740
      %761 = vrot.lane.b32.xlu0 %v745, 16
      %v762 = vpop.permute.xlu0 %761
      %763 = vrot.lane.b32.xlu0 %v746, 16
      %v764 = vpop.permute.xlu0 %763
      %765 = vrot.lane.b32.xlu0 %v747, 16
      %v766 = vpop.permute.xlu0 %765
      %767 = vrot.lane.b32.xlu0 %v748, 16
      %v768 = vpop.permute.xlu0 %767
      %769 = vrot.lane.b32.xlu0 %v749, 16
      %v770 = vpop.permute.xlu0 %769
      %771 = vrot.lane.b32.xlu0 %v750, 16
      %v772 = vpop.permute.xlu0 %771
      %773 = vrot.lane.b32.xlu0 %v751, 16
      %v774 = vpop.permute.xlu0 %773
      %775 = vrot.lane.b32.xlu0 %v752, 16
      %v776 = vpop.permute.xlu0 %775
      %v785 = vsel %vm463, %v705, %v762
      %v786 = vsel %vm463, %v710, %v764
      %v787 = vsel %vm463, %v715, %v766
      %v788 = vsel %vm463, %v720, %v768
      %v789 = vsel %vm463, %v725, %v770
      %v790 = vsel %vm463, %v730, %v772
      %v791 = vsel %vm463, %v735, %v774
      %v792 = vsel %vm463, %v740, %v776
      %793 = vmatprep.subr.mxu0 0.0
      %794 = vmatpush1.msra.mxu0 %v785
      %795 = vmatprep.subr.mxu0 0.0
      %796 = vmatpush1.msra.mxu0 %v786
      %797 = vmatprep.subr.mxu0 0.0
      %798 = vmatpush1.msra.mxu0 %v787
      %799 = vmatprep.subr.mxu0 0.0
      %800 = vmatpush1.msra.mxu0 %v788
      %801 = vmatprep.subr.mxu0 0.0
      %802 = vmatpush1.msra.mxu0 %v789
      %803 = vmatprep.subr.mxu0 0.0
      %804 = vmatpush1.msra.mxu0 %v790
      %805 = vmatprep.subr.mxu0 0.0
      %806 = vmatpush1.msra.mxu0 %v791
      %807 = vmatprep.subr.mxu0 0.0
      %808 = vmatpush1.msra.mxu0 %v792
      %809 = vmatprep.subr.mxu0 0.0
      %810 = vmatpush1.msra.mxu0 0.0
      %811 = vmatprep.subr.mxu0 0.0
      %812 = vmatpush1.msra.mxu0 0.0
      %813 = vmatprep.subr.mxu0 0.0
      %814 = vmatpush1.msra.mxu0 0.0
      %815 = vmatprep.subr.mxu0 0.0
      %816 = vmatpush1.msra.mxu0 0.0
      %817 = vmatprep.subr.mxu0 0.0
      %818 = vmatpush1.msra.mxu0 0.0
      %819 = vmatprep.subr.mxu0 0.0
      %820 = vmatpush1.msra.mxu0 0.0
      %821 = vmatprep.subr.mxu0 0.0
      %822 = vmatpush1.msra.mxu0 0.0
      %823 = vmatprep.subr.mxu0 0.0
      %824 = vmatpush1.msra.mxu0 0.0
      %825 = vmatprep.subr.mxu0 0.0
      %826 = vmatpush1.msra.mxu0 0.0
      %827 = vmatprep.subr.mxu0 0.0
      %828 = vmatpush1.msra.mxu0 0.0
      %829 = vmatprep.subr.mxu0 0.0
      %830 = vmatpush1.msra.mxu0 0.0
      %831 = vmatprep.subr.mxu0 0.0
      %832 = vmatpush1.msra.mxu0 0.0
      %833 = vmatprep.subr.mxu0 0.0
      %834 = vmatpush1.msra.mxu0 0.0
      %835 = vmatprep.subr.mxu0 0.0
      %836 = vmatpush1.msra.mxu0 0.0
      %837 = vmatprep.subr.mxu0 0.0
      %838 = vmatpush1.msra.mxu0 0.0
      %839 = vmatprep.subr.mxu0 0.0
      %840 = vmatpush1.msra.mxu0 0.0
      %841 = vmatprep.subr.mxu0 0.0
      %842 = vmatpush1.msra.mxu0 0.0
      %843 = vmatprep.subr.mxu0 0.0
      %844 = vmatpush1.msra.mxu0 0.0
      %845 = vmatprep.subr.mxu0 0.0
      %846 = vmatpush1.msra.mxu0 0.0
      %847 = vmatprep.subr.mxu0 0.0
      %848 = vmatpush1.msra.mxu0 0.0
      %849 = vmatprep.subr.mxu0 0.0
      %850 = vmatpush1.msra.mxu0 0.0
      %851 = vmatprep.subr.mxu0 0.0
      %852 = vmatpush1.msra.mxu0 0.0
      %853 = vmatprep.subr.mxu0 0.0
      %854 = vmatpush1.msra.mxu0 0.0
      %855 = vmatprep.subr.mxu0 0.0
      %856 = vmatpush1.msra.mxu0 0.0
      %857 = vmatprep.mubr.f32.mxu0 0.0
      %858 = vmatmul.mubr.f32.gmra.mrb[0].mxu0 %v474
      %v859 = vpop.f32.mrb[0].mxu0
      %v860 = vadd.f32 0.0, %v859
      %v861 = vpop.f32.mrb[0].mxu0
      %862 = vdwg.mxu0
      %v863 = vmul.f32 %v860, 0.015625
      %v864 = vmul.f32 %v863, %v863
      %866 = vrot.lane.b32.xlu0 %v864, 16
      %v867 = vpop.permute.xlu0 %866
      %v869 = vsub.f32 %v863, %v867
      %v870 = vadd.f32 %v869, 0.001
      %v871 = vrsqrt.pop %v870
      %v874 = vunpack.c.l.s4 1966171168
      %v875 = vunpack.c.0.s8 %v874
      %v876 = vlaneseq
      %v877 = vshrl.u32 %v876, 7
      %v878 = vsub.s32 %v875, %v877
      %v879 = vrot.slane %v871, %v878
      %v881 = vunpack.c.l.s4 1966171168
      %v882 = vunpack.c.0.s8 %v881
      %v883 = vlaneseq
      %v884 = vshrl.u32 %v883, 7
      %v885 = vsub.s32 %v882, %v884
      %v886 = vrot.slane %v879, %v885
      %887 = vrot.lane.b32.xlu0 %v886, 112
      %v888 = vpop.permute.xlu0 %887
      %v890 = vmul.f32 %v743, %v888
      %v891 = vmul.f32 %v863, %v890
      %v892 = vsub.f32 %v744, %v891
      %v894 = vlaneseq
      %v895 = vshrl.u32 %v894, 7
      %v896 = vsub.s32 0, %v895
      %v897 = vrot.slane %v890, %v896
      %v899 = vmul.f32 %v705, %v897
      %v900 = vmul.f32 %v710, %v897
      %v901 = vmul.f32 %v715, %v897
      %v902 = vmul.f32 %v720, %v897
      %v903 = vmul.f32 %v725, %v897
      %v904 = vmul.f32 %v730, %v897
      %v905 = vmul.f32 %v735, %v897
      %v906 = vmul.f32 %v740, %v897
      %v908 = vlaneseq
      %v909 = vshrl.u32 %v908, 7
      %v910 = vsub.s32 0, %v909
      %v911 = vrot.slane %v892, %v910
      %v913 = vadd.f32 %v899, %v911
      %v914 = vadd.f32 %v900, %v911
      %v915 = vadd.f32 %v901, %v911
      %v916 = vadd.f32 %v902, %v911
      %v917 = vadd.f32 %v903, %v911
      %v918 = vadd.f32 %v904, %v911
      %v919 = vadd.f32 %v905, %v911
      %v920 = vadd.f32 %v906, %v911
      %v921 = vmax.f32 %v913, 0.0
      %v922 = vmax.f32 %v914, 0.0
      %v923 = vmax.f32 %v915, 0.0
      %v924 = vmax.f32 %v916, 0.0
      %v925 = vmax.f32 %v917, 0.0
      %v926 = vmax.f32 %v918, 0.0
      %v927 = vmax.f32 %v919, 0.0
      %v928 = vmax.f32 %v920, 0.0
      %929 = vst.msk [vmem:[%s278] sm:$0xff] %vm463, %v921
      %930 = vst.msk [vmem:[%s278 + $0x8] sm:$0xff] %vm463, %v922
      %931 = vst.msk [vmem:[%s278 + $0x10] sm:$0xff] %vm463, %v923
      %932 = vst.msk [vmem:[%s278 + $0x18] sm:$0xff] %vm463, %v924
      %933 = vst.msk [vmem:[%s278 + $0x20] sm:$0xff] %vm463, %v925
      %934 = vst.msk [vmem:[%s278 + $0x28] sm:$0xff] %vm463, %v926
      %935 = vst.msk [vmem:[%s278 + $0x30] sm:$0xff] %vm463, %v927
      %936 = vst.msk [vmem:[%s278 + $0x38] sm:$0xff] %vm463, %v928
      %p937 = scmp.lt.s32.totalorder %s18, 7
      %s938 = scalar_select %p937, %s18, 7
      %s939 = smul.addr %s938, 8
      %s940 = smul.addr %s939, 8
      %s941 = scalar_lea.vmem %s7, %s940
      // Predicated region
      $region49: #{tpu_custom_call.1} parent=47 // pred_check
        %p942 = pneg %p188
      $region50: #{tpu_custom_call.1} parent=47 // pred_check_branch
        %944 = sbr.rel (%p942) target = $region52
      $region51: #{tpu_custom_call.1} parent=47 // pred_region
        _
      $region52: #{tpu_custom_call.1} parent=47 // pred_fallthru
        _
    $region48: #{tpu_custom_call.1} parent=5 // pred_fallthru
      _
    %p945 = scmp.le.s32.totalorder 2, %s13
    // Predicated region
    $region53: #{tpu_custom_call.1} parent=5 // pred_check
      %p946 = pneg %p945
    $region54: #{tpu_custom_call.1} parent=5 // pred_check_branch
      %948 = sbr.rel (%p946) target = $region56
    $region55: #{tpu_custom_call.1} parent=5 // pred_region
      %s949 = ssub.s32 %s13, 2
      // Predicated region
      $region57: #{tpu_custom_call.1} parent=55 // pred_check
        %p950 = pneg %p194
      $region58: #{tpu_custom_call.1} parent=55 // pred_check_branch
        %952 = sbr.rel (%p950) target = $region60
      $region59: #{tpu_custom_call.1} parent=55 // pred_region
        %p953 = scmp.lt.s32.totalorder %s19, 7
        %s954 = scalar_select %p953, %s19, 7
        %s955 = smul.addr %s954, 8
        %s956 = smul.addr %s955, 8
        %s957 = scalar_lea.vmem %s7, %s956
      $region60: #{tpu_custom_call.1} parent=55 // pred_fallthru
        _
    $region56: #{tpu_custom_call.1} parent=5 // pred_fallthru
      _
  $region6: #{tpu_custom_call.1} parent=0 // loop_footer
    %s17 = sadd.s32 1, %s13
  $region7: #{tpu_custom_call.1} parent=0 // loop_footer_branch
    %12 = sbr.rel target = $region3
  $region8: #{tpu_custom_call.1} parent=0 // loop_exit
    _

</llo_original>
